<compile_context>
chip_gen: v5e
topology: v5e:2x2
jax: 0.10.0
libtpu: 0.0.40
codegen_flags: <defaults>
</compile_context>

<pallas_src>
from typing import NamedTuple

import jax
import jax.numpy as jnp
from jax.experimental import pallas as pl
from jax.experimental.pallas import tpu as pltpu


def _round_up(x, m):
    return ((x + m - 1) // m) * m


def _cdiv(a, b):
    return -(-a // b)


class PreparedParams(NamedTuple):
    """One-time prepared (cast + zero-padded + packed) parameters."""
    w_packed: jax.Array   # (5, K, P) bf16 ; layer l in [:dims[l], :dims[l+1]]
    b_packed: jax.Array   # (5, 1, P) f32  ; layer l in [:, :dims[l+1]]
    dims: tuple           # (d_in, h1, h2, h3, h4, d_out)
    d_in: int
    d_out: int
    p: int                # padded lane width of activations / output
    k: int                # padded row dim of the packed weight buffer


def prepare_params(params):
    """Hoisted out of the forward hot path: cast to bf16, zero-pad, pack."""
    dims = [params["w1"].shape[0]] + [params[f"w{i}"].shape[1] for i in range(1, 6)]
    d_in, d_out = dims[0], dims[-1]
    P = _round_up(max(dims[1:]), 128)          # lane width of hidden/output acts
    K = _round_up(max(d_in, P), 16)            # bf16 sublane-friendly row dim

    w_packed = jnp.zeros((5, K, P), jnp.bfloat16)
    b_packed = jnp.zeros((5, 1, P), jnp.float32)
    for l in range(5):
        w = params[f"w{l + 1}"]
        b = params[f"b{l + 1}"].reshape(1, -1)
        fi, fo = w.shape
        w_packed = w_packed.at[l, :fi, :fo].set(w.astype(jnp.bfloat16))
        b_packed = b_packed.at[l, :, :fo].set(b.astype(jnp.float32))
    return PreparedParams(w_packed, b_packed, tuple(dims), d_in, d_out, P, K)


def _make_mlp_kernel(d_in):
    """Fused 5-layer MLP on one batch tile. All operands live in VMEM.

    x is read as f32 and cast to bf16 in-kernel; every matmul accumulates in
    f32 on the MXU; bias add + ReLU happen in f32; hidden activations are cast
    back to bf16 to keep the MXU in bf16 mode.  Output is stored f32,
    lane-dense (last dim is a multiple of 128).
    """

    def kernel(x_ref, w_ref, b_ref, o_ref):
        P = o_ref.shape[-1]
        h = x_ref[...].astype(jnp.bfloat16)                       # (tile, d_in)

        # Layer 1: only the first d_in rows of the packed W1 are meaningful.
        y = jnp.dot(h, w_ref[0, :d_in, :], preferred_element_type=jnp.float32)
        y = y + b_ref[0]                                          # (1, P) bias
        h = jnp.maximum(y, 0.0).astype(jnp.bfloat16)              # (tile, P)

        # Layers 2..4 (dropout(p=0) between layers is the identity).
        for l in range(1, 4):
            y = jnp.dot(h, w_ref[l, :P, :],
                        preferred_element_type=jnp.float32) + b_ref[l]
            h = jnp.maximum(y, 0.0).astype(jnp.bfloat16)

        # Layer 5: no activation.
        y = jnp.dot(h, w_ref[4, :P, :],
                    preferred_element_type=jnp.float32) + b_ref[4]
        o_ref[...] = y.astype(o_ref.dtype)

    return kernel


def nn1_forward(x, prep: PreparedParams, *, batch_tile=512, min_steps=1):
    """Run the fused MLP Pallas kernel.

    x:    (B, input_size) float32
    prep: output of prepare_params()
    Returns (B, output_size) float32.

    batch_tile caps the per-step tile; min_steps can be set to 2 on v7x to
    guarantee both TensorCores get a balanced share of the batch.
    """
    B, d_in = x.shape
    assert d_in == prep.d_in, (d_in, prep.d_in)
    P = prep.p

    # Grid / tile: minimal padding (Bp ~ round_up(B, 8)), balanced steps.
    n_steps = max(min_steps, _cdiv(B, batch_tile))
    tile = _round_up(_cdiv(B, n_steps), 8)
    Bp = n_steps * tile
    if Bp != B:
        x = jnp.pad(x, ((0, Bp - B), (0, 0)))

    # Only the activation tile moves along the batch axis; the packed weight /
    # bias buffers use constant index_maps so they are DMA'd once and stay
    # resident in VMEM across grid steps.
    in_specs = [
        pl.BlockSpec((tile, d_in), lambda i: (i, 0)),
        pl.BlockSpec(prep.w_packed.shape, lambda i: (0, 0, 0)),
        pl.BlockSpec(prep.b_packed.shape, lambda i: (0, 0, 0)),
    ]
    out_spec = pl.BlockSpec((tile, P), lambda i: (i, 0))

    # Advisory cost estimate for XLA's scheduler.
    flops = 2 * Bp * (d_in * P + 4 * P * P)
    bytes_accessed = (Bp * d_in * 4 + Bp * P * 4
                      + prep.w_packed.size * 2 + prep.b_packed.size * 4)
    cost = pl.CostEstimate(flops=flops, transcendentals=0,
                           bytes_accessed=bytes_accessed)

    out = pl.pallas_call(
        _make_mlp_kernel(d_in),
        out_shape=jax.ShapeDtypeStruct((Bp, P), jnp.float32),
        grid_spec=pltpu.PrefetchScalarGridSpec(
            num_scalar_prefetch=0,
            grid=(n_steps,),
            in_specs=in_specs,
            out_specs=out_spec,
        ),
        compiler_params=pltpu.CompilerParams(
            dimension_semantics=("parallel",)),
        cost_estimate=cost,
    )(x, prep.w_packed, prep.b_packed)

    return out[:B, :prep.d_out]


# ----------------------------- reference / setup -----------------------------

def _xavier_uniform(key, fan_in, fan_out, dtype=jnp.float32):
    # matches torch.nn.init.xavier_uniform_ (gain=1)
    limit = jnp.sqrt(6.0 / (fan_in + fan_out))
    return jax.random.uniform(key, (fan_in, fan_out), dtype,
                              minval=-limit, maxval=limit)


def make_params(key, input_size, hidden_sizes, output_size):
    dims = [input_size] + list(hidden_sizes) + [output_size]
    params = {}
    keys = jax.random.split(key, len(dims) - 1)
    for i, (fi, fo) in enumerate(zip(dims[:-1], dims[1:]), start=1):
        params[f"w{i}"] = _xavier_uniform(keys[i - 1], fi, fo)
        params[f"b{i}"] = jnp.zeros((1, fo), jnp.float32)   # bias.fill_(0)
    return params


def reference_forward_f32(x, params):
    h = x
    for i in range(1, 5):
        h = jnp.maximum(h @ params[f"w{i}"] + params[f"b{i}"], 0.0)
    return h @ params["w5"] + params["b5"]


def reference_forward_bf16(x, params):
    """Mirrors the kernel numerics: bf16 operands, f32 accumulation.

    Note: hidden activations are truncated to bf16 between layers, so the
    kernel agrees with the pure-f32 chain only to ~1e-1.
    """
    h = x.astype(jnp.bfloat16)
    for i in range(1, 5):
        y = jnp.dot(h, params[f"w{i}"].astype(jnp.bfloat16),
                    preferred_element_type=jnp.float32) + params[f"b{i}"]
        h = jnp.maximum(y, 0.0).astype(jnp.bfloat16)
    return jnp.dot(h, params["w5"].astype(jnp.bfloat16),
                   preferred_element_type=jnp.float32) + params["b5"]


if __name__ == "__main__":
    key = jax.random.PRNGKey(0)
    k_param, k_x = jax.random.split(key)

    input_size = 32
    hidden_sizes = (64, 64, 32, 32)
    output_size = 16
    batch = 50   # ragged -> exercises batch padding

    params = make_params(k_param, input_size, hidden_sizes, output_size)
    prep = prepare_params(params)      # one-time: cast + pad + pack
    x = jax.random.normal(k_x, (batch, input_size), jnp.float32)

    # Single fat grid step (default batch_tile): tile=56, Bp=56, grid=(1,).
    out1 = jax.block_until_ready(nn1_forward(x, prep))
    # Two balanced grid steps (small batch_tile): tile=32, Bp=64, grid=(2,).
    out2 = jax.block_until_ready(nn1_forward(x, prep, batch_tile=32))

    assert out1.shape == (batch, output_size)
    assert out2.shape == (batch, output_size)

    ref_bf16 = reference_forward_bf16(x, params)
    ref_f32 = reference_forward_f32(x, params)
    for out in (out1, out2):
        assert jnp.allclose(out, ref_bf16, atol=2e-2, rtol=2e-2), \
            "mismatch vs bf16 reference"
        assert jnp.allclose(out, ref_f32, atol=1e-1, rtol=1e-1), \
            "mismatch vs f32 reference"

    print("KERNEL_OK")
</pallas_src>

<mosaic_0001>
module attributes {stable_mosaic.version = 11 : i64} {
  func.func @kernel(%arg0: i32, %arg1: memref<56x32xf32, #tpu.memory_space<vmem>>, %arg2: memref<5x128x128xbf16, #tpu.memory_space<vmem>>, %arg3: memref<5x1x128xf32, #tpu.memory_space<vmem>>, %arg4: memref<56x128xf32, #tpu.memory_space<vmem>>) attributes {dimension_semantics = [#tpu.dimension_semantics<parallel>], iteration_bounds = array<i64: 1>, scalar_prefetch = 0 : i64, scratch_operands = 0 : i64, tpu.core_type = #tpu.core_type<tc>, window_params = [{transform_indices = @transform_0, window_bounds = array<i64: 56, 32>}, {pipeline_mode = #tpu.pipeline_mode<synchronous>, transform_indices = @transform_1, window_bounds = array<i64: 5, 128, 128>}, {pipeline_mode = #tpu.pipeline_mode<synchronous>, transform_indices = @transform_2, window_bounds = array<i64: 5, 1, 128>}, {transform_indices = @transform_3, window_bounds = array<i64: 56, 128>}]} {
    %c0 = arith.constant 0 : index
    %c0_0 = arith.constant 0 : index
    %0 = vector.load %arg1[%c0, %c0_0] : memref<56x32xf32, #tpu.memory_space<vmem>>, vector<56x32xf32>
    %1 = arith.truncf %0 : vector<56x32xf32> to vector<56x32xbf16>
    %c0_1 = arith.constant 0 : index
    %c0_2 = arith.constant 0 : index
    %c0_3 = arith.constant 0 : index
    %2 = vector.load %arg2[%c0_1, %c0_2, %c0_3] : memref<5x128x128xbf16, #tpu.memory_space<vmem>>, vector<1x32x128xbf16>
    %3 = vector.shape_cast %2 : vector<1x32x128xbf16> to vector<32x128xbf16>
    %cst = arith.constant dense<0.000000e+00> : vector<56x128xf32>
    %4 = tpu.matmul %1, %3, %cst {dimension_numbers = #tpu.dot_dimension_numbers<[1], [0], [0], [1], [0, 0, 1, 1], [], []>} : vector<56x32xbf16>, vector<32x128xbf16>, vector<56x128xf32> -> vector<56x128xf32>
    %c0_4 = arith.constant 0 : index
    %c0_5 = arith.constant 0 : index
    %c0_6 = arith.constant 0 : index
    %5 = vector.load %arg3[%c0_4, %c0_5, %c0_6] : memref<5x1x128xf32, #tpu.memory_space<vmem>>, vector<1x1x128xf32>
    %6 = vector.shape_cast %5 : vector<1x1x128xf32> to vector<1x128xf32>
    %7 = vector.broadcast %6 : vector<1x128xf32> to vector<56x128xf32>
    %8 = arith.addf %4, %7 : vector<56x128xf32>
    %cst_7 = arith.constant 0.000000e+00 : f32
    %9 = vector.broadcast %cst_7 : f32 to vector<56x128xf32>
    %10 = arith.maximumf %8, %9 : vector<56x128xf32>
    %11 = arith.truncf %10 : vector<56x128xf32> to vector<56x128xbf16>
    %c1 = arith.constant 1 : index
    %c0_8 = arith.constant 0 : index
    %c0_9 = arith.constant 0 : index
    %12 = vector.load %arg2[%c1, %c0_8, %c0_9] : memref<5x128x128xbf16, #tpu.memory_space<vmem>>, vector<1x128x128xbf16>
    %13 = vector.shape_cast %12 : vector<1x128x128xbf16> to vector<128x128xbf16>
    %cst_10 = arith.constant dense<0.000000e+00> : vector<56x128xf32>
    %14 = tpu.matmul %11, %13, %cst_10 {dimension_numbers = #tpu.dot_dimension_numbers<[1], [0], [0], [1], [0, 0, 1, 1], [], []>} : vector<56x128xbf16>, vector<128x128xbf16>, vector<56x128xf32> -> vector<56x128xf32>
    %c1_11 = arith.constant 1 : index
    %c0_12 = arith.constant 0 : index
    %c0_13 = arith.constant 0 : index
    %15 = vector.load %arg3[%c1_11, %c0_12, %c0_13] : memref<5x1x128xf32, #tpu.memory_space<vmem>>, vector<1x1x128xf32>
    %16 = vector.shape_cast %15 : vector<1x1x128xf32> to vector<1x128xf32>
    %17 = vector.broadcast %16 : vector<1x128xf32> to vector<56x128xf32>
    %18 = arith.addf %14, %17 : vector<56x128xf32>
    %cst_14 = arith.constant 0.000000e+00 : f32
    %19 = vector.broadcast %cst_14 : f32 to vector<56x128xf32>
    %20 = arith.maximumf %18, %19 : vector<56x128xf32>
    %21 = arith.truncf %20 : vector<56x128xf32> to vector<56x128xbf16>
    %c2 = arith.constant 2 : index
    %c0_15 = arith.constant 0 : index
    %c0_16 = arith.constant 0 : index
    %22 = vector.load %arg2[%c2, %c0_15, %c0_16] : memref<5x128x128xbf16, #tpu.memory_space<vmem>>, vector<1x128x128xbf16>
    %23 = vector.shape_cast %22 : vector<1x128x128xbf16> to vector<128x128xbf16>
    %cst_17 = arith.constant dense<0.000000e+00> : vector<56x128xf32>
    %24 = tpu.matmul %21, %23, %cst_17 {dimension_numbers = #tpu.dot_dimension_numbers<[1], [0], [0], [1], [0, 0, 1, 1], [], []>} : vector<56x128xbf16>, vector<128x128xbf16>, vector<56x128xf32> -> vector<56x128xf32>
    %c2_18 = arith.constant 2 : index
    %c0_19 = arith.constant 0 : index
    %c0_20 = arith.constant 0 : index
    %25 = vector.load %arg3[%c2_18, %c0_19, %c0_20] : memref<5x1x128xf32, #tpu.memory_space<vmem>>, vector<1x1x128xf32>
    %26 = vector.shape_cast %25 : vector<1x1x128xf32> to vector<1x128xf32>
    %27 = vector.broadcast %26 : vector<1x128xf32> to vector<56x128xf32>
    %28 = arith.addf %24, %27 : vector<56x128xf32>
    %cst_21 = arith.constant 0.000000e+00 : f32
    %29 = vector.broadcast %cst_21 : f32 to vector<56x128xf32>
    %30 = arith.maximumf %28, %29 : vector<56x128xf32>
    %31 = arith.truncf %30 : vector<56x128xf32> to vector<56x128xbf16>
    %c3 = arith.constant 3 : index
    %c0_22 = arith.constant 0 : index
    %c0_23 = arith.constant 0 : index
    %32 = vector.load %arg2[%c3, %c0_22, %c0_23] : memref<5x128x128xbf16, #tpu.memory_space<vmem>>, vector<1x128x128xbf16>
    %33 = vector.shape_cast %32 : vector<1x128x128xbf16> to vector<128x128xbf16>
    %cst_24 = arith.constant dense<0.000000e+00> : vector<56x128xf32>
    %34 = tpu.matmul %31, %33, %cst_24 {dimension_numbers = #tpu.dot_dimension_numbers<[1], [0], [0], [1], [0, 0, 1, 1], [], []>} : vector<56x128xbf16>, vector<128x128xbf16>, vector<56x128xf32> -> vector<56x128xf32>
    %c3_25 = arith.constant 3 : index
    %c0_26 = arith.constant 0 : index
    %c0_27 = arith.constant 0 : index
    %35 = vector.load %arg3[%c3_25, %c0_26, %c0_27] : memref<5x1x128xf32, #tpu.memory_space<vmem>>, vector<1x1x128xf32>
    %36 = vector.shape_cast %35 : vector<1x1x128xf32> to vector<1x128xf32>
    %37 = vector.broadcast %36 : vector<1x128xf32> to vector<56x128xf32>
    %38 = arith.addf %34, %37 : vector<56x128xf32>
    %cst_28 = arith.constant 0.000000e+00 : f32
    %39 = vector.broadcast %cst_28 : f32 to vector<56x128xf32>
    %40 = arith.maximumf %38, %39 : vector<56x128xf32>
    %41 = arith.truncf %40 : vector<56x128xf32> to vector<56x128xbf16>
    %c4 = arith.constant 4 : index
    %c0_29 = arith.constant 0 : index
    %c0_30 = arith.constant 0 : index
    %42 = vector.load %arg2[%c4, %c0_29, %c0_30] : memref<5x128x128xbf16, #tpu.memory_space<vmem>>, vector<1x128x128xbf16>
    %43 = vector.shape_cast %42 : vector<1x128x128xbf16> to vector<128x128xbf16>
    %cst_31 = arith.constant dense<0.000000e+00> : vector<56x128xf32>
    %44 = tpu.matmul %41, %43, %cst_31 {dimension_numbers = #tpu.dot_dimension_numbers<[1], [0], [0], [1], [0, 0, 1, 1], [], []>} : vector<56x128xbf16>, vector<128x128xbf16>, vector<56x128xf32> -> vector<56x128xf32>
    %c4_32 = arith.constant 4 : index
    %c0_33 = arith.constant 0 : index
    %c0_34 = arith.constant 0 : index
    %45 = vector.load %arg3[%c4_32, %c0_33, %c0_34] : memref<5x1x128xf32, #tpu.memory_space<vmem>>, vector<1x1x128xf32>
    %46 = vector.shape_cast %45 : vector<1x1x128xf32> to vector<1x128xf32>
    %47 = vector.broadcast %46 : vector<1x128xf32> to vector<56x128xf32>
    %48 = arith.addf %44, %47 : vector<56x128xf32>
    %c0_35 = arith.constant 0 : index
    %c0_36 = arith.constant 0 : index
    %49 = vector.load %arg4[%c0_35, %c0_36] : memref<56x128xf32, #tpu.memory_space<vmem>>, vector<56x128xf32>
    tpu.vector_store %arg4[%c0_35, %c0_36], %48 {strides = array<i32>} : memref<56x128xf32, #tpu.memory_space<vmem>>, vector<56x128xf32>,
    return
  }
  func.func @transform_0(%arg0: i32) -> (i32, i32) {
    %c0_i32 = arith.constant 0 : i32
    %c0_i32_0 = arith.constant 0 : i32
    return %arg0, %c0_i32 : i32, i32
  }
  func.func @transform_1(%arg0: i32) -> (i32, i32, i32) {
    %c0_i32 = arith.constant 0 : i32
    %c0_i32_0 = arith.constant 0 : i32
    %c0_i32_1 = arith.constant 0 : i32
    %c0_i32_2 = arith.constant 0 : i32
    return %c0_i32, %c0_i32_0, %c0_i32_1 : i32, i32, i32
  }
  func.func @transform_2(%arg0: i32) -> (i32, i32, i32) {
    %c0_i32 = arith.constant 0 : i32
    %c0_i32_0 = arith.constant 0 : i32
    %c0_i32_1 = arith.constant 0 : i32
    %c0_i32_2 = arith.constant 0 : i32
    return %c0_i32, %c0_i32_0, %c0_i32_1 : i32, i32, i32
  }
  func.func @transform_3(%arg0: i32) -> (i32, i32) {
    %c0_i32 = arith.constant 0 : i32
    %c0_i32_0 = arith.constant 0 : i32
    return %arg0, %c0_i32 : i32, i32
  }
}

</mosaic_0001>

<llo_original>
// kernel: tpu_custom_call.1
$region0: #{tpu_custom_call.1}
  #allocation0 [shape = 'u32[]', space=smem, size = 0x4, offset = 0x4, fixed_abs, tag = 'smem constant byte address 0x4 - core index']
  #allocation1 [shape = 'u32[72,128]{1,0:T(1,128)}', space=vmem, size = 0x9000, scoped, tag = 'internal scratch']
  %s0 = inlined_call_operand.vmem [shape: f32[56,32], index: 0, kind: input, shape index: {}]
  %s1 = inlined_call_operand.hbm [shape: bf16[5,128,128], index: 1, kind: input, shape index: {}]
  %s2 = inlined_call_operand.vmem [shape: f32[5,1,128], index: 2, kind: input, shape index: {}]
  %s3 = inlined_call_operand.hbm [shape: f32[56,128], index: 3, kind: output, shape index: {}]
  %s4 = sld [smem:[#allocation0]]
  $region26: #{tpu_custom_call.1} parent=0
    _
  %s6 = ssub.s32 1, %s4
  %s7 = scalar_select 0, %s6, %s4
  $region1: #{tpu_custom_call.1} parent=0
    #allocation2 [shape = 'u8[163840]{0}', space=vmem, size = 0x28000, scoped, tag = 'input window, operand 1, single buffered']
    #allocation3 [shape = 's32[1]{0}', space=sflag, size = 0x4, scoped, tag = 'scoped memory for tpu_custom_call.1']
    #allocation4 [shape = 's32[1]{0}', space=sflag, size = 0x4, scoped, tag = 'scoped memory for tpu_custom_call.1']
    #allocation5 [shape = 'u8[28672]{0}', space=vmem, size = 0x7000, scoped, tag = 'output window, operand 0, single buffered']
    %8 = vsyncpa [#allocation3], 0
    %9 = vsyncpa [#allocation4], 0
    // Predicated region
    $region2: #{tpu_custom_call.1} parent=1 // pred_check
      _
    $region3: #{tpu_custom_call.1} parent=1 // pred_check_branch
      %11 = sbr.rel (0) target = $region5
    $region4: #{tpu_custom_call.1} parent=1 // pred_region
      _
    $region5: #{tpu_custom_call.1} parent=1 // pred_fallthru
      _
    // Predicated region
    $region6: #{tpu_custom_call.1} parent=1 // pred_check
      _
    $region7: #{tpu_custom_call.1} parent=1 // pred_check_branch
      %13 = sbr.rel (0) target = $region9
    $region8: #{tpu_custom_call.1} parent=1 // pred_region
      %15 = vsyncadd [#allocation3], 0
      %s16 = sshll.u32 %s1, 4
      %s17 = int_to_ptr.hbm [resolvable:$true] %s16
      %s18 = sshll.u32 [#allocation2], 4
      %s19 = int_to_ptr.vmem [resolvable:$true] %s18
      %24 = dma.hbm_to_vmem [thread:$0]  %s17, 5120, %s19, [#allocation3], 64, 64, 4
    $region9: #{tpu_custom_call.1} parent=1 // pred_fallthru
      _
    // Predicated region
    $region10: #{tpu_custom_call.1} parent=1 // pred_check
      _
    $region11: #{tpu_custom_call.1} parent=1 // pred_check_branch
      %26 = sbr.rel (0) target = $region13
    $region12: #{tpu_custom_call.1} parent=1 // pred_region
      _
    $region13: #{tpu_custom_call.1} parent=1 // pred_fallthru
      _
    // Predicated region
    $region14: #{tpu_custom_call.1} parent=1 // pred_check
      _
    $region15: #{tpu_custom_call.1} parent=1 // pred_check_branch
      %28 = sbr.rel (0) target = $region17
    $region16: #{tpu_custom_call.1} parent=1 // pred_region
      %30 = dma.done [#allocation3], 5120
    $region17: #{tpu_custom_call.1} parent=1 // pred_fallthru
      _
    %v32 = vld [vmem:[%s0] sm:$0xff]
    %v33 = vld [vmem:[%s0 + $0x8] sm:$0xff]
    %v34 = vld [vmem:[%s0 + $0x10] sm:$0xff]
    %v35 = vld [vmem:[%s0 + $0x18] sm:$0xff]
    %v36 = vld [vmem:[%s0 + $0x20] sm:$0xff]
    %v37 = vld [vmem:[%s0 + $0x28] sm:$0xff]
    %v38 = vld [vmem:[%s0 + $0x30] sm:$0xff]
    %v39 = vpack.c.bf16 %v33, %v32
    %v40 = vpack.c.bf16 %v35, %v34
    %v41 = vpack.c.bf16 %v37, %v36
    %v42 = vpack.c.bf16 %v38, %v38
    %v43 = vld [vmem:[#allocation2] sm:$0xf]
    %v44 = vld [vmem:[#allocation2 + $0x4] sm:$0xf]
    %v45 = vld [vmem:[#allocation2 + $0x8] sm:$0xf]
    %v46 = vld [vmem:[#allocation2 + $0xc] sm:$0xf]
    %v47 = vld [vmem:[%s2] sm:$0x1]
    %v49 = vperm.slane %v47, 0
    %v55 = vunpack.c.l.b16 %v43
    %v56 = vunpack.c.l.b16 %v44
    %v57 = vunpack.c.l.b16 %v45
    %v58 = vunpack.c.l.b16 %v46
    %v59 = vpack.c.b16 %v56, %v55
    %v60 = vpack.c.b16 %v58, %v57
    %vm63 = vcmask 261120
    %v65 = vsel %vm63, %v39, 0
    %v68 = vsel %vm63, %v40, 0
    %v71 = vsel %vm63, %v41, 0
    %v74 = vsel %vm63, %v42, 0
    %76 = vmatpush.bf16.msra.mxu0 0
    %77 = vmatpush.bf16.msra.mxu0 0
    %78 = vmatpush.bf16.msra.mxu0 0
    %79 = vmatpush.bf16.msra.mxu0 0
    %80 = vmatpush.bf16.msra.mxu0 0
    %81 = vmatpush.bf16.msra.mxu0 0
    %82 = vmatpush.bf16.msra.mxu0 %v60
    %83 = vmatpush.bf16.msra.mxu0 %v59
    %84 = vmatmul.bf16.gmra.mxu0 %v65
    %v85 = vpop.f32.mrf.mxu0
    %v86 = vadd.f32 %v49, %v85
    %v87 = vpop.f32.mrf.mxu0
    %v88 = vadd.f32 %v49, %v87
    %89 = vmatmul.bf16.gmra.mxu0 %v68
    %v90 = vpop.f32.mrf.mxu0
    %v91 = vadd.f32 %v49, %v90
    %v92 = vpop.f32.mrf.mxu0
    %v93 = vadd.f32 %v49, %v92
    %94 = vmatmul.bf16.gmra.mxu0 %v71
    %v95 = vpop.f32.mrf.mxu0
    %v96 = vadd.f32 %v49, %v95
    %v97 = vpop.f32.mrf.mxu0
    %v98 = vadd.f32 %v49, %v97
    %99 = vmatmul.bf16.gmra.mxu0 %v74
    %v100 = vpop.f32.mrf.mxu0
    %v101 = vadd.f32 %v49, %v100
    %v102 = vpop.f32.mrf.mxu0
    %103 = vdwg.mxu0
    %v104 = vmax.f32 %v86, 0.0
    %v105 = vmax.f32 %v88, 0.0
    %v106 = vmax.f32 %v91, 0.0
    %v107 = vmax.f32 %v93, 0.0
    %v108 = vmax.f32 %v96, 0.0
    %v109 = vmax.f32 %v98, 0.0
    %v110 = vmax.f32 %v101, 0.0
    %v111 = vpack.c.bf16 %v105, %v104
    %v112 = vpack.c.bf16 %v107, %v106
    %v113 = vpack.c.bf16 %v109, %v108
    %v114 = vpack.c.bf16 %v110, %v110
    %s115 = scalar_lea.vmem [#allocation2], 64
    %v116 = vld [vmem:[%s115] sm:$0xf]
    %v117 = vld [vmem:[%s115 + $0x4] sm:$0xf]
    %v118 = vld [vmem:[%s115 + $0x8] sm:$0xf]
    %v119 = vld [vmem:[%s115 + $0xc] sm:$0xf]
    %v120 = vld [vmem:[%s115 + $0x10] sm:$0xf]
    %v121 = vld [vmem:[%s115 + $0x14] sm:$0xf]
    %v122 = vld [vmem:[%s115 + $0x18] sm:$0xf]
    %v123 = vld [vmem:[%s115 + $0x1c] sm:$0xf]
    %v124 = vld [vmem:[%s115 + $0x20] sm:$0xf]
    %v125 = vld [vmem:[%s115 + $0x24] sm:$0xf]
    %v126 = vld [vmem:[%s115 + $0x28] sm:$0xf]
    %v127 = vld [vmem:[%s115 + $0x2c] sm:$0xf]
    %v128 = vld [vmem:[%s115 + $0x30] sm:$0xf]
    %v129 = vld [vmem:[%s115 + $0x34] sm:$0xf]
    %v130 = vld [vmem:[%s115 + $0x38] sm:$0xf]
    %v131 = vld [vmem:[%s115 + $0x3c] sm:$0xf]
    %s132 = scalar_lea.vmem %s2, 1
    %v133 = vld [vmem:[%s132] sm:$0x1]
    %v135 = vperm.slane %v133, 0
    %v153 = vunpack.c.l.b16 %v116
    %v154 = vunpack.c.l.b16 %v117
    %v155 = vunpack.c.l.b16 %v118
    %v156 = vunpack.c.l.b16 %v119
    %v157 = vunpack.c.l.b16 %v120
    %v158 = vunpack.c.l.b16 %v121
    %v159 = vunpack.c.l.b16 %v122
    %v160 = vunpack.c.l.b16 %v123
    %v161 = vunpack.c.l.b16 %v124
    %v162 = vunpack.c.l.b16 %v125
    %v163 = vunpack.c.l.b16 %v126
    %v164 = vunpack.c.l.b16 %v127
    %v165 = vunpack.c.l.b16 %v128
    %v166 = vunpack.c.l.b16 %v129
    %v167 = vunpack.c.l.b16 %v130
    %v168 = vunpack.c.l.b16 %v131
    %v169 = vpack.c.b16 %v154, %v153
    %v170 = vpack.c.b16 %v156, %v155
    %v171 = vpack.c.b16 %v158, %v157
    %v172 = vpack.c.b16 %v160, %v159
    %v173 = vpack.c.b16 %v162, %v161
    %v174 = vpack.c.b16 %v164, %v163
    %v175 = vpack.c.b16 %v166, %v165
    %v176 = vpack.c.b16 %v168, %v167
    %185 = vmatpush.bf16.msra.mxu0 %v176
    %186 = vmatpush.bf16.msra.mxu0 %v175
    %187 = vmatpush.bf16.msra.mxu0 %v174
    %188 = vmatpush.bf16.msra.mxu0 %v173
    %189 = vmatpush.bf16.msra.mxu0 %v172
    %190 = vmatpush.bf16.msra.mxu0 %v171
    %191 = vmatpush.bf16.msra.mxu0 %v170
    %192 = vmatpush.bf16.msra.mxu0 %v169
    %193 = vmatmul.bf16.gmra.mxu0 %v111
    %v194 = vpop.f32.mrf.mxu0
    %v195 = vadd.f32 %v135, %v194
    %v196 = vpop.f32.mrf.mxu0
    %v197 = vadd.f32 %v135, %v196
    %198 = vmatmul.bf16.gmra.mxu0 %v112
    %v199 = vpop.f32.mrf.mxu0
    %v200 = vadd.f32 %v135, %v199
    %v201 = vpop.f32.mrf.mxu0
    %v202 = vadd.f32 %v135, %v201
    %203 = vmatmul.bf16.gmra.mxu0 %v113
    %v204 = vpop.f32.mrf.mxu0
    %v205 = vadd.f32 %v135, %v204
    %v206 = vpop.f32.mrf.mxu0
    %v207 = vadd.f32 %v135, %v206
    %208 = vmatmul.bf16.gmra.mxu0 %v114
    %v209 = vpop.f32.mrf.mxu0
    %v210 = vadd.f32 %v135, %v209
    %v211 = vpop.f32.mrf.mxu0
    %212 = vdwg.mxu0
    %v213 = vmax.f32 %v195, 0.0
    %v214 = vmax.f32 %v197, 0.0
    %v215 = vmax.f32 %v200, 0.0
    %v216 = vmax.f32 %v202, 0.0
    %v217 = vmax.f32 %v205, 0.0
    %v218 = vmax.f32 %v207, 0.0
    %v219 = vmax.f32 %v210, 0.0
    %v220 = vpack.c.bf16 %v214, %v213
    %v221 = vpack.c.bf16 %v216, %v215
    %v222 = vpack.c.bf16 %v218, %v217
    %v223 = vpack.c.bf16 %v219, %v219
    %s224 = scalar_lea.vmem [#allocation2], 128
    %v225 = vld [vmem:[%s224] sm:$0xf]
    %v226 = vld [vmem:[%s224 + $0x4] sm:$0xf]
    %v227 = vld [vmem:[%s224 + $0x8] sm:$0xf]
    %v228 = vld [vmem:[%s224 + $0xc] sm:$0xf]
    %v229 = vld [vmem:[%s224 + $0x10] sm:$0xf]
    %v230 = vld [vmem:[%s224 + $0x14] sm:$0xf]
    %v231 = vld [vmem:[%s224 + $0x18] sm:$0xf]
    %v232 = vld [vmem:[%s224 + $0x1c] sm:$0xf]
    %v233 = vld [vmem:[%s224 + $0x20] sm:$0xf]
    %v234 = vld [vmem:[%s224 + $0x24] sm:$0xf]
    %v235 = vld [vmem:[%s224 + $0x28] sm:$0xf]
    %v236 = vld [vmem:[%s224 + $0x2c] sm:$0xf]
    %v237 = vld [vmem:[%s224 + $0x30] sm:$0xf]
    %v238 = vld [vmem:[%s224 + $0x34] sm:$0xf]
    %v239 = vld [vmem:[%s224 + $0x38] sm:$0xf]
    %v240 = vld [vmem:[%s224 + $0x3c] sm:$0xf]
    %s241 = scalar_lea.vmem %s2, 2
    %v242 = vld [vmem:[%s241] sm:$0x1]
    %v244 = vperm.slane %v242, 0
    %v262 = vunpack.c.l.b16 %v225
    %v263 = vunpack.c.l.b16 %v226
    %v264 = vunpack.c.l.b16 %v227
    %v265 = vunpack.c.l.b16 %v228
    %v266 = vunpack.c.l.b16 %v229
    %v267 = vunpack.c.l.b16 %v230
    %v268 = vunpack.c.l.b16 %v231
    %v269 = vunpack.c.l.b16 %v232
    %v270 = vunpack.c.l.b16 %v233
    %v271 = vunpack.c.l.b16 %v234
    %v272 = vunpack.c.l.b16 %v235
    %v273 = vunpack.c.l.b16 %v236
    %v274 = vunpack.c.l.b16 %v237
    %v275 = vunpack.c.l.b16 %v238
    %v276 = vunpack.c.l.b16 %v239
    %v277 = vunpack.c.l.b16 %v240
    %v278 = vpack.c.b16 %v263, %v262
    %v279 = vpack.c.b16 %v265, %v264
    %v280 = vpack.c.b16 %v267, %v266
    %v281 = vpack.c.b16 %v269, %v268
    %v282 = vpack.c.b16 %v271, %v270
    %v283 = vpack.c.b16 %v273, %v272
    %v284 = vpack.c.b16 %v275, %v274
    %v285 = vpack.c.b16 %v277, %v276
    %294 = vmatpush.bf16.msra.mxu0 %v285
    %295 = vmatpush.bf16.msra.mxu0 %v284
    %296 = vmatpush.bf16.msra.mxu0 %v283
    %297 = vmatpush.bf16.msra.mxu0 %v282
    %298 = vmatpush.bf16.msra.mxu0 %v281
    %299 = vmatpush.bf16.msra.mxu0 %v280
    %300 = vmatpush.bf16.msra.mxu0 %v279
    %301 = vmatpush.bf16.msra.mxu0 %v278
    %302 = vmatmul.bf16.gmra.mxu0 %v220
    %v303 = vpop.f32.mrf.mxu0
    %v304 = vadd.f32 %v244, %v303
    %v305 = vpop.f32.mrf.mxu0
    %v306 = vadd.f32 %v244, %v305
    %307 = vmatmul.bf16.gmra.mxu0 %v221
    %v308 = vpop.f32.mrf.mxu0
    %v309 = vadd.f32 %v244, %v308
    %v310 = vpop.f32.mrf.mxu0
    %v311 = vadd.f32 %v244, %v310
    %312 = vmatmul.bf16.gmra.mxu0 %v222
    %v313 = vpop.f32.mrf.mxu0
    %v314 = vadd.f32 %v244, %v313
    %v315 = vpop.f32.mrf.mxu0
    %v316 = vadd.f32 %v244, %v315
    %317 = vmatmul.bf16.gmra.mxu0 %v223
    %v318 = vpop.f32.mrf.mxu0
    %v319 = vadd.f32 %v244, %v318
    %v320 = vpop.f32.mrf.mxu0
    %321 = vdwg.mxu0
    %v322 = vmax.f32 %v304, 0.0
    %v323 = vmax.f32 %v306, 0.0
    %v324 = vmax.f32 %v309, 0.0
    %v325 = vmax.f32 %v311, 0.0
    %v326 = vmax.f32 %v314, 0.0
    %v327 = vmax.f32 %v316, 0.0
    %v328 = vmax.f32 %v319, 0.0
    %v329 = vpack.c.bf16 %v323, %v322
    %v330 = vpack.c.bf16 %v325, %v324
    %v331 = vpack.c.bf16 %v327, %v326
    %v332 = vpack.c.bf16 %v328, %v328
    %s333 = scalar_lea.vmem [#allocation2], 192
    %v334 = vld [vmem:[%s333] sm:$0xf]
    %v335 = vld [vmem:[%s333 + $0x4] sm:$0xf]
    %v336 = vld [vmem:[%s333 + $0x8] sm:$0xf]
    %v337 = vld [vmem:[%s333 + $0xc] sm:$0xf]
    %v338 = vld [vmem:[%s333 + $0x10] sm:$0xf]
    %v339 = vld [vmem:[%s333 + $0x14] sm:$0xf]
    %v340 = vld [vmem:[%s333 + $0x18] sm:$0xf]
    %v341 = vld [vmem:[%s333 + $0x1c] sm:$0xf]
    %v342 = vld [vmem:[%s333 + $0x20] sm:$0xf]
    %v343 = vld [vmem:[%s333 + $0x24] sm:$0xf]
    %v344 = vld [vmem:[%s333 + $0x28] sm:$0xf]
    %v345 = vld [vmem:[%s333 + $0x2c] sm:$0xf]
    %v346 = vld [vmem:[%s333 + $0x30] sm:$0xf]
    %v347 = vld [vmem:[%s333 + $0x34] sm:$0xf]
    %v348 = vld [vmem:[%s333 + $0x38] sm:$0xf]
    %v349 = vld [vmem:[%s333 + $0x3c] sm:$0xf]
    %s350 = scalar_lea.vmem %s2, 3
    %v351 = vld [vmem:[%s350] sm:$0x1]
    %v353 = vperm.slane %v351, 0
    %v371 = vunpack.c.l.b16 %v334
    %v372 = vunpack.c.l.b16 %v335
    %v373 = vunpack.c.l.b16 %v336
    %v374 = vunpack.c.l.b16 %v337
    %v375 = vunpack.c.l.b16 %v338
    %v376 = vunpack.c.l.b16 %v339
    %v377 = vunpack.c.l.b16 %v340
    %v378 = vunpack.c.l.b16 %v341
    %v379 = vunpack.c.l.b16 %v342
    %v380 = vunpack.c.l.b16 %v343
    %v381 = vunpack.c.l.b16 %v344
    %v382 = vunpack.c.l.b16 %v345
    %v383 = vunpack.c.l.b16 %v346
    %v384 = vunpack.c.l.b16 %v347
    %v385 = vunpack.c.l.b16 %v348
    %v386 = vunpack.c.l.b16 %v349
    %v387 = vpack.c.b16 %v372, %v371
    %v388 = vpack.c.b16 %v374, %v373
    %v389 = vpack.c.b16 %v376, %v375
    %v390 = vpack.c.b16 %v378, %v377
    %v391 = vpack.c.b16 %v380, %v379
    %v392 = vpack.c.b16 %v382, %v381
    %v393 = vpack.c.b16 %v384, %v383
    %v394 = vpack.c.b16 %v386, %v385
    %403 = vmatpush.bf16.msra.mxu0 %v394
    %404 = vmatpush.bf16.msra.mxu0 %v393
    %405 = vmatpush.bf16.msra.mxu0 %v392
    %406 = vmatpush.bf16.msra.mxu0 %v391
    %407 = vmatpush.bf16.msra.mxu0 %v390
    %408 = vmatpush.bf16.msra.mxu0 %v389
    %409 = vmatpush.bf16.msra.mxu0 %v388
    %410 = vmatpush.bf16.msra.mxu0 %v387
    %411 = vmatmul.bf16.gmra.mxu0 %v329
    %v412 = vpop.f32.mrf.mxu0
    %v413 = vadd.f32 %v353, %v412
    %v414 = vpop.f32.mrf.mxu0
    %v415 = vadd.f32 %v353, %v414
    %416 = vmatmul.bf16.gmra.mxu0 %v330
    %v417 = vpop.f32.mrf.mxu0
    %v418 = vadd.f32 %v353, %v417
    %v419 = vpop.f32.mrf.mxu0
    %v420 = vadd.f32 %v353, %v419
    %421 = vmatmul.bf16.gmra.mxu0 %v331
    %v422 = vpop.f32.mrf.mxu0
    %v423 = vadd.f32 %v353, %v422
    %v424 = vpop.f32.mrf.mxu0
    %v425 = vadd.f32 %v353, %v424
    %426 = vmatmul.bf16.gmra.mxu0 %v332
    %v427 = vpop.f32.mrf.mxu0
    %v428 = vadd.f32 %v353, %v427
    %v429 = vpop.f32.mrf.mxu0
    %430 = vdwg.mxu0
    %v431 = vmax.f32 %v413, 0.0
    %v432 = vmax.f32 %v415, 0.0
    %v433 = vmax.f32 %v418, 0.0
    %v434 = vmax.f32 %v420, 0.0
    %v435 = vmax.f32 %v423, 0.0
    %v436 = vmax.f32 %v425, 0.0
    %v437 = vmax.f32 %v428, 0.0
    %v438 = vpack.c.bf16 %v432, %v431
    %v439 = vpack.c.bf16 %v434, %v433
    %v440 = vpack.c.bf16 %v436, %v435
    %v441 = vpack.c.bf16 %v437, %v437
    %s442 = scalar_lea.vmem [#allocation2], 256
    %v443 = vld [vmem:[%s442] sm:$0xf]
    %v444 = vld [vmem:[%s442 + $0x4] sm:$0xf]
    %v445 = vld [vmem:[%s442 + $0x8] sm:$0xf]
    %v446 = vld [vmem:[%s442 + $0xc] sm:$0xf]
    %v447 = vld [vmem:[%s442 + $0x10] sm:$0xf]
    %v448 = vld [vmem:[%s442 + $0x14] sm:$0xf]
    %v449 = vld [vmem:[%s442 + $0x18] sm:$0xf]
    %v450 = vld [vmem:[%s442 + $0x1c] sm:$0xf]
    %v451 = vld [vmem:[%s442 + $0x20] sm:$0xf]
    %v452 = vld [vmem:[%s442 + $0x24] sm:$0xf]
    %v453 = vld [vmem:[%s442 + $0x28] sm:$0xf]
    %v454 = vld [vmem:[%s442 + $0x2c] sm:$0xf]
    %v455 = vld [vmem:[%s442 + $0x30] sm:$0xf]
    %v456 = vld [vmem:[%s442 + $0x34] sm:$0xf]
    %v457 = vld [vmem:[%s442 + $0x38] sm:$0xf]
    %v458 = vld [vmem:[%s442 + $0x3c] sm:$0xf]
    %s459 = scalar_lea.vmem %s2, 4
    %v460 = vld [vmem:[%s459] sm:$0x1]
    %v462 = vperm.slane %v460, 0
    %v480 = vunpack.c.l.b16 %v443
    %v481 = vunpack.c.l.b16 %v444
    %v482 = vunpack.c.l.b16 %v445
    %v483 = vunpack.c.l.b16 %v446
    %v484 = vunpack.c.l.b16 %v447
    %v485 = vunpack.c.l.b16 %v448
    %v486 = vunpack.c.l.b16 %v449
    %v487 = vunpack.c.l.b16 %v450
    %v488 = vunpack.c.l.b16 %v451
    %v489 = vunpack.c.l.b16 %v452
    %v490 = vunpack.c.l.b16 %v453
    %v491 = vunpack.c.l.b16 %v454
    %v492 = vunpack.c.l.b16 %v455
    %v493 = vunpack.c.l.b16 %v456
    %v494 = vunpack.c.l.b16 %v457
    %v495 = vunpack.c.l.b16 %v458
    %v496 = vpack.c.b16 %v481, %v480
    %v497 = vpack.c.b16 %v483, %v482
    %v498 = vpack.c.b16 %v485, %v484
    %v499 = vpack.c.b16 %v487, %v486
    %v500 = vpack.c.b16 %v489, %v488
    %v501 = vpack.c.b16 %v491, %v490
    %v502 = vpack.c.b16 %v493, %v492
    %v503 = vpack.c.b16 %v495, %v494
    %512 = vmatpush.bf16.msra.mxu0 %v503
    %513 = vmatpush.bf16.msra.mxu0 %v502
    %514 = vmatpush.bf16.msra.mxu0 %v501
    %515 = vmatpush.bf16.msra.mxu0 %v500
    %516 = vmatpush.bf16.msra.mxu0 %v499
    %517 = vmatpush.bf16.msra.mxu0 %v498
    %518 = vmatpush.bf16.msra.mxu0 %v497
    %519 = vmatpush.bf16.msra.mxu0 %v496
    %520 = vmatmul.bf16.gmra.mxu0 %v438
    %v521 = vpop.f32.mrf.mxu0
    %v522 = vadd.f32 %v462, %v521
    %v523 = vpop.f32.mrf.mxu0
    %v524 = vadd.f32 %v462, %v523
    %525 = vmatmul.bf16.gmra.mxu0 %v439
    %v526 = vpop.f32.mrf.mxu0
    %v527 = vadd.f32 %v462, %v526
    %v528 = vpop.f32.mrf.mxu0
    %v529 = vadd.f32 %v462, %v528
    %530 = vmatmul.bf16.gmra.mxu0 %v440
    %v531 = vpop.f32.mrf.mxu0
    %v532 = vadd.f32 %v462, %v531
    %v533 = vpop.f32.mrf.mxu0
    %v534 = vadd.f32 %v462, %v533
    %535 = vmatmul.bf16.gmra.mxu0 %v441
    %v536 = vpop.f32.mrf.mxu0
    %v537 = vadd.f32 %v462, %v536
    %v538 = vpop.f32.mrf.mxu0
    %539 = vdwg.mxu0
    %540 = vst [vmem:[#allocation5] sm:$0xff] %v522
    %541 = vst [vmem:[#allocation5 + $0x8] sm:$0xff] %v524
    %542 = vst [vmem:[#allocation5 + $0x10] sm:$0xff] %v527
    %543 = vst [vmem:[#allocation5 + $0x18] sm:$0xff] %v529
    %544 = vst [vmem:[#allocation5 + $0x20] sm:$0xff] %v532
    %545 = vst [vmem:[#allocation5 + $0x28] sm:$0xff] %v534
    %546 = vst [vmem:[#allocation5 + $0x30] sm:$0xff] %v537
    // Predicated region
    $region18: #{tpu_custom_call.1} parent=1 // pred_check
      _
    $region19: #{tpu_custom_call.1} parent=1 // pred_check_branch
      %548 = sbr.rel (0) target = $region21
    $region20: #{tpu_custom_call.1} parent=1 // pred_region
      %550 = vsyncadd [#allocation4], 0
      %s551 = sshll.u32 [#allocation5], 4
      %s552 = int_to_ptr.vmem [resolvable:$true] %s551
      %s553 = sshll.u32 %s3, 4
      %s554 = int_to_ptr.hbm [resolvable:$true] %s553
      %559 = dma.vmem_to_hbm [thread:$0]  %s552, 896, %s554, [#allocation4], 128, 128, 8
    $region21: #{tpu_custom_call.1} parent=1 // pred_fallthru
      _
    // Predicated region
    $region22: #{tpu_custom_call.1} parent=1 // pred_check
      _
    $region23: #{tpu_custom_call.1} parent=1 // pred_check_branch
      %561 = sbr.rel (0) target = $region25
    $region24: #{tpu_custom_call.1} parent=1 // pred_region
      %563 = dma.done [#allocation4], 896
    $region25: #{tpu_custom_call.1} parent=1 // pred_fallthru
      _
    %564 = vsyncpa [#allocation3], 1
    %565 = vsyncpa [#allocation4], 1

</llo_original>
